<compile_context>
chip_gen: v7x
topology: tpu7x:2x2x1
jax: 0.10.0
libtpu: 0.0.40
codegen_flags: <defaults>
</compile_context>

<pallas_src>
import jax
import jax.numpy as jnp
from jax import lax
from jax.experimental import pallas as pl
from jax.experimental.pallas import tpu as pltpu


def _round_up(x, m):
    return -(-x // m) * m


def _cdiv(a, b):
    return -(-a // b)


def _num_tensorcores():
    """Best-effort TensorCore-per-chip count (2 on v7x, 1 on v5e/v6e)."""
    try:
        info = pltpu.get_tpu_info()
        for name in ("num_cores", "num_tensorcores", "tensorcore_count",
                     "cores_per_chip", "core_count"):
            v = getattr(info, name, None)
            if isinstance(v, int) and v > 0:
                return max(1, min(2, v))
    except Exception:
        pass
    return 1


def _choose_tiling(B, D, itemsize):
    bytes_per_row = max(1, D * itemsize)
    # Size the block in bytes (not rows): ~8 MiB per input block.
    target_block_bytes = 8 << 20
    row_cap = max(8, min(32768, ((target_block_bytes // bytes_per_row) // 8) * 8))

    total_bytes = B * bytes_per_row
    # Split across TensorCores only when the chip actually has 2 of them
    # (v7x) and there is enough data to be worth it.
    num_splits = 2 if (_num_tensorcores() >= 2 and total_bytes >= (8 << 20)
                       and B >= 16) else 1

    if num_splits == 1 and B <= row_cap:
        # Single full-extent block on the row axis: no masking, no partial
        # tiles, works for any B (block dim equals the full array dim).
        row_tile = B
        steps = 1
    else:
        rows_per_split = _cdiv(B, num_splits)
        row_tile = min(row_cap, max(8, (rows_per_split // 8) * 8))
        steps = _cdiv(rows_per_split, row_tile)

    block_bytes = row_tile * bytes_per_row
    # 2 inputs x double-buffer + headroom; clamp safely under per-TC VMEM on
    # every generation (<= 48 MiB << 64 MiB per-TC on v7x).
    vmem_limit = int(min(48 << 20, max(16 << 20, 4 * block_bytes + (8 << 20))))
    return num_splits, steps, row_tile, vmem_limit


def _make_mse_kernel(B, D, row_tile, steps, needs_mask, inv_n):
    # Reshape-to-(groups,8,D) accumulation is a free relayout only when the
    # lane dim is a multiple of 128 and the tile is sublane-aligned.
    reshape_ok = (D % 128 == 0) and (row_tile % 8 == 0)

    def kernel(a_ref, b_ref, o_ref, acc_ref):
        c = pl.program_id(0)
        i = pl.program_id(1)

        @pl.when(i == 0)
        def _():
            acc_ref[...] = jnp.zeros_like(acc_ref)

        a = a_ref[...].astype(jnp.float32)
        b = b_ref[...].astype(jnp.float32)
        d = a - b
        d2 = d * d

        if needs_mask:
            # Mask rows past the true row count (handles the partial last
            # block and any fully-out-of-range blocks from the split rounding).
            start = (c * steps + i) * row_tile
            rows = lax.broadcasted_iota(jnp.int32, d2.shape, 0)
            d2 = jnp.where(rows < (B - start), d2, 0.0)

        if reshape_ok:
            # Pure VPU elementwise adds in the steady state (no XLU).
            acc_ref[...] += d2.reshape(row_tile // 8, 8, D).sum(axis=0)
        else:
            # Sublane-axis reduce; avoids a tile-crossing reshape relayout.
            # XLU slot is free in this DMA-bound kernel.
            acc_ref[0:1, :] += jnp.sum(d2, axis=0, keepdims=True)

        @pl.when(i == steps - 1)
        def _():
            # Single cross-lane/sublane reduce + *1/N, once per split.
            total = jnp.sum(acc_ref[...]) * inv_n
            o_ref[...] = jnp.broadcast_to(total, o_ref.shape)

    return kernel


@jax.jit
def mse_pallas(embedding_1, embedding_2):
    """Mean squared error over all elements of two same-shaped arrays."""
    assert embedding_1.shape == embedding_2.shape
    e1, e2 = embedding_1, embedding_2
    if e1.ndim == 0:
        e1 = e1.reshape(1, 1)
        e2 = e2.reshape(1, 1)
    elif e1.ndim == 1:
        e1 = e1.reshape(1, -1)
        e2 = e2.reshape(1, -1)
    elif e1.ndim > 2:
        e1 = e1.reshape(-1, e1.shape[-1])
        e2 = e2.reshape(-1, e2.shape[-1])

    B, D = e1.shape
    n_total = B * D
    itemsize = jnp.dtype(e1.dtype).itemsize

    num_splits, steps, row_tile, vmem_limit = _choose_tiling(B, D, itemsize)
    blocks = _cdiv(B, row_tile)          # number of blocks with valid rows
    max_block = blocks - 1
    needs_mask = (num_splits * steps * row_tile != B)

    if needs_mask:
        # Clamp intended block indices so every DMA starts in-bounds; the
        # in-kernel mask zeroes any rows that don't belong to this block.
        def in_map(c, i):
            return (jnp.minimum(c * steps + i, max_block), 0)
    else:
        def in_map(c, i):
            return (c * steps + i, 0)

    in_spec = pl.BlockSpec((row_tile, D), in_map)
    out_spec = pl.BlockSpec((1, 8, 128), lambda c, i: (c, 0, 0))

    kernel = _make_mse_kernel(B, D, row_tile, steps, needs_mask,
                              1.0 / float(n_total))

    partials = pl.pallas_call(
        kernel,
        out_shape=jax.ShapeDtypeStruct((num_splits, 8, 128), jnp.float32),
        grid_spec=pltpu.PrefetchScalarGridSpec(
            num_scalar_prefetch=0,
            grid=(num_splits, steps),
            in_specs=[in_spec, in_spec],
            out_specs=out_spec,
            scratch_shapes=[pltpu.VMEM((8, D), jnp.float32)],
        ),
        compiler_params=pltpu.CompilerParams(
            dimension_semantics=("parallel", "arbitrary"),
            vmem_limit_bytes=vmem_limit,
        ),
    )(e1, e2)

    # Tiny epilogue: sum at most 2 per-split scalars (already scaled by 1/N).
    return jnp.sum(partials[:, 0, 0])


if __name__ == "__main__":
    key = jax.random.PRNGKey(0)
    k1, k2, k3, k4, k5, k6 = jax.random.split(key, 6)

    # Small embedding pair matching the module's typical usage.
    B, D = 16, 256
    embedding_1 = jax.random.normal(k1, (B, D), dtype=jnp.float32)
    embedding_2 = jax.random.normal(k2, (B, D), dtype=jnp.float32)
    loss = mse_pallas(embedding_1, embedding_2)
    jax.block_until_ready(loss)
    ref = jnp.mean((embedding_1 - embedding_2) ** 2)
    assert jnp.allclose(loss, ref, rtol=1e-5, atol=1e-6), (loss, ref)

    # Ragged row count: exercises in-kernel tail handling (no HBM padding).
    B2, D2 = 4099, 256
    a = jax.random.normal(k3, (B2, D2), dtype=jnp.float32)
    b = jax.random.normal(k4, (B2, D2), dtype=jnp.float32)
    loss2 = mse_pallas(a, b)
    jax.block_until_ready(loss2)
    ref2 = jnp.mean((a - b) ** 2)
    assert jnp.allclose(loss2, ref2, rtol=1e-4, atol=1e-5), (loss2, ref2)

    # bf16 inputs with a lane-unfriendly feature dim (D % 128 != 0, ragged B).
    B3, D3 = 1001, 200
    c1 = jax.random.normal(k5, (B3, D3), dtype=jnp.bfloat16)
    c2 = jax.random.normal(k6, (B3, D3), dtype=jnp.bfloat16)
    loss3 = mse_pallas(c1, c2)
    jax.block_until_ready(loss3)
    ref3 = jnp.mean((c1.astype(jnp.float32) - c2.astype(jnp.float32)) ** 2)
    assert jnp.allclose(loss3, ref3, rtol=1e-3, atol=1e-4), (loss3, ref3)

    print("KERNEL_OK")
</pallas_src>

<mosaic_0001>
module attributes {stable_mosaic.version = 11 : i64} {
  func.func @kernel(%arg0: i32, %arg1: i32, %arg2: memref<16x256xf32, #tpu.memory_space<vmem>>, %arg3: memref<16x256xf32, #tpu.memory_space<vmem>>, %arg4: memref<1x8x128xf32, #tpu.memory_space<vmem>>, %arg5: memref<8x256xf32, #tpu.memory_space<vmem>>) attributes {dimension_semantics = [#tpu.dimension_semantics<parallel>, #tpu.dimension_semantics<arbitrary>], iteration_bounds = array<i64: 1, 1>, scalar_prefetch = 0 : i64, scratch_operands = 1 : i64, tpu.core_type = #tpu.core_type<tc>, window_params = [{transform_indices = @transform_0, window_bounds = array<i64: 16, 256>}, {transform_indices = @transform_1, window_bounds = array<i64: 16, 256>}, {transform_indices = @transform_2, window_bounds = array<i64: 1, 8, 128>}]} {
    %c0_i32 = arith.constant 0 : i32
    %0 = arith.cmpi eq, %arg1, %c0_i32 : i32
    %1 = arith.extui %0 : i1 to i32
    %c0_i32_0 = arith.constant 0 : i32
    %2 = arith.cmpi ne, %1, %c0_i32_0 : i32
    scf.if %2 {
      %cst_10 = arith.constant 0.000000e+00 : f32
      %15 = vector.broadcast %cst_10 : f32 to vector<8x256xf32>
      %c0_11 = arith.constant 0 : index
      %c0_12 = arith.constant 0 : index
      %16 = vector.load %arg5[%c0_11, %c0_12] : memref<8x256xf32, #tpu.memory_space<vmem>>, vector<8x256xf32>
      tpu.vector_store %arg5[%c0_11, %c0_12], %15 {strides = array<i32>} : memref<8x256xf32, #tpu.memory_space<vmem>>, vector<8x256xf32>,
    } else {
    }
    %c0 = arith.constant 0 : index
    %c0_1 = arith.constant 0 : index
    %3 = vector.load %arg2[%c0, %c0_1] : memref<16x256xf32, #tpu.memory_space<vmem>>, vector<16x256xf32>
    %c0_2 = arith.constant 0 : index
    %c0_3 = arith.constant 0 : index
    %4 = vector.load %arg3[%c0_2, %c0_3] : memref<16x256xf32, #tpu.memory_space<vmem>>, vector<16x256xf32>
    %5 = arith.subf %3, %4 : vector<16x256xf32>
    %6 = arith.mulf %5, %5 : vector<16x256xf32>
    %c0_4 = arith.constant 0 : index
    %c0_5 = arith.constant 0 : index
    %7 = vector.load %arg5[%c0_4, %c0_5] : memref<8x256xf32, #tpu.memory_space<vmem>>, vector<8x256xf32>
    %8 = vector.shape_cast %6 : vector<16x256xf32> to vector<2x8x256xf32>
    %cst = arith.constant dense<0.000000e+00> : vector<8x256xf32>
    %9 = vector.multi_reduction <add>, %8, %cst [0] : vector<2x8x256xf32> to vector<8x256xf32>
    %10 = arith.addf %7, %9 : vector<8x256xf32>
    %c0_6 = arith.constant 0 : index
    %c0_7 = arith.constant 0 : index
    %11 = vector.load %arg5[%c0_6, %c0_7] : memref<8x256xf32, #tpu.memory_space<vmem>>, vector<8x256xf32>
    tpu.vector_store %arg5[%c0_6, %c0_7], %10 {strides = array<i32>} : memref<8x256xf32, #tpu.memory_space<vmem>>, vector<8x256xf32>,
    %c0_i32_8 = arith.constant 0 : i32
    %12 = arith.cmpi eq, %arg1, %c0_i32_8 : i32
    %13 = arith.extui %12 : i1 to i32
    %c0_i32_9 = arith.constant 0 : i32
    %14 = arith.cmpi ne, %13, %c0_i32_9 : i32
    scf.if %14 {
      %c0_10 = arith.constant 0 : index
      %c0_11 = arith.constant 0 : index
      %15 = vector.load %arg5[%c0_10, %c0_11] : memref<8x256xf32, #tpu.memory_space<vmem>>, vector<8x256xf32>
      %16 = vector.shape_cast %15 : vector<8x256xf32> to vector<1x8x256xf32>
      %cst_12 = arith.constant dense<0.000000e+00> : vector<1xf32>
      %17 = vector.multi_reduction <add>, %16, %cst_12 [1, 2] : vector<1x8x256xf32> to vector<1xf32>
      %18 = vector.shape_cast %17 : vector<1xf32> to vector<1x1x1xf32>
      %19 = vector.extract %18[0, 0, 0] : f32 from vector<1x1x1xf32>
      %cst_13 = arith.constant 2.44140625E-4 : f32
      %20 = arith.mulf %19, %cst_13 : f32
      %21 = vector.broadcast %20 : f32 to vector<1x8x128xf32>
      %c0_14 = arith.constant 0 : index
      %c0_15 = arith.constant 0 : index
      %c0_16 = arith.constant 0 : index
      %22 = vector.load %arg4[%c0_14, %c0_15, %c0_16] : memref<1x8x128xf32, #tpu.memory_space<vmem>>, vector<1x8x128xf32>
      tpu.vector_store %arg4[%c0_14, %c0_15, %c0_16], %21 {strides = array<i32>} : memref<1x8x128xf32, #tpu.memory_space<vmem>>, vector<1x8x128xf32>,
    } else {
    }
    return
  }
  func.func @transform_0(%arg0: i32, %arg1: i32) -> (i32, i32) {
    %c1_i32 = arith.constant 1 : i32
    %0 = arith.muli %arg0, %c1_i32 : i32
    %1 = arith.addi %0, %arg1 : i32
    %c0_i32 = arith.constant 0 : i32
    %c0_i32_0 = arith.constant 0 : i32
    return %1, %c0_i32 : i32, i32
  }
  func.func @transform_1(%arg0: i32, %arg1: i32) -> (i32, i32) {
    %c1_i32 = arith.constant 1 : i32
    %0 = arith.muli %arg0, %c1_i32 : i32
    %1 = arith.addi %0, %arg1 : i32
    %c0_i32 = arith.constant 0 : i32
    %c0_i32_0 = arith.constant 0 : i32
    return %1, %c0_i32 : i32, i32
  }
  func.func @transform_2(%arg0: i32, %arg1: i32) -> (i32, i32, i32) {
    %c0_i32 = arith.constant 0 : i32
    %c0_i32_0 = arith.constant 0 : i32
    %c0_i32_1 = arith.constant 0 : i32
    return %arg0, %c0_i32, %c0_i32_0 : i32, i32, i32
  }
}

</mosaic_0001>

<llo_original>
// kernel: mse_pallas.1
$region0: #{mse_pallas.1}
  #allocation0 [shape = 'u32[]', space=smem, size = 0x4, offset = 0x4, fixed_abs, tag = 'smem constant byte address 0x4 - core index']
  #allocation1 [shape = 'u32[144,128]{1,0:T(1,128)}', space=vmem, size = 0x12000, scoped, tag = 'internal scratch']
  #allocation2 [shape = 'f32[8,256]{1,0:T(8,128)}', space=vmem, size = 0x2000, scoped, tag = 'scratch operand']
  %s0 = inlined_call_operand.hbm [shape: f32[16,256], index: 0, kind: input, shape index: {}]
  %s1 = inlined_call_operand.hbm [shape: f32[16,256], index: 1, kind: input, shape index: {}]
  %s2 = inlined_call_operand.vmem [shape: f32[1,8,128], index: 2, kind: output, shape index: {}]
  %s3 = sld [smem:[#allocation0]]
  $region34: #{mse_pallas.1} parent=0
    _
  %s5 = ssub.s32 1, %s3
  %s6 = scalar_select 0, %s5, %s3
  $region1: #{mse_pallas.1} parent=0
    #allocation3 [shape = 'u8[16384]{0}', space=vmem, size = 0x4000, scoped, tag = 'input window, operand 0, single buffered']
    #allocation4 [shape = 's32[1]{0}', space=sflag, size = 0x4, scoped, tag = 'scoped memory for mse_pallas.1']
    #allocation5 [shape = 'u8[16384]{0}', space=vmem, size = 0x4000, scoped, tag = 'input window, operand 1, single buffered']
    #allocation6 [shape = 's32[1]{0}', space=sflag, size = 0x4, scoped, tag = 'scoped memory for mse_pallas.1']
    %7 = vsyncpa [#allocation4], 0
    %8 = vsyncpa [#allocation6], 0
    // Predicated region
    $region2: #{mse_pallas.1} parent=1 // pred_check
      _
    $region3: #{mse_pallas.1} parent=1 // pred_check_branch
      %10 = sbr.rel (0) target = $region5
    $region4: #{mse_pallas.1} parent=1 // pred_region
      %s11 = sadd.s32 0, 0
      %s12 = smul.u32 2, %s11
      %s14 = ssub.s32 512, 512
      %15 = vsyncadd [#allocation4], %s14
      %s16 = smul.addr %s12, 2
      %s17 = smul.addr %s16, 128
      %s18 = scalar_lea.hbm %s0, %s17
      %s19 = sshll.u32 [#allocation3], 4
      %s20 = int_to_ptr.vmem [resolvable:$true] %s19
      %25 = dma.hbm_to_vmem [thread:$0]  %s18, 512, %s20, [#allocation4], 256, 256, 16
    $region5: #{mse_pallas.1} parent=1 // pred_fallthru
      _
    // Predicated region
    $region6: #{mse_pallas.1} parent=1 // pred_check
      _
    $region7: #{mse_pallas.1} parent=1 // pred_check_branch
      %27 = sbr.rel (0) target = $region9
    $region8: #{mse_pallas.1} parent=1 // pred_region
      %s28 = sadd.s32 0, 0
      %s29 = smul.u32 2, %s28
      %s31 = ssub.s32 512, 512
      %32 = vsyncadd [#allocation6], %s31
      %s33 = smul.addr %s29, 2
      %s34 = smul.addr %s33, 128
      %s35 = scalar_lea.hbm %s1, %s34
      %s36 = sshll.u32 [#allocation5], 4
      %s37 = int_to_ptr.vmem [resolvable:$true] %s36
      %42 = dma.hbm_to_vmem [thread:$0]  %s35, 512, %s37, [#allocation6], 256, 256, 16
    $region9: #{mse_pallas.1} parent=1 // pred_fallthru
      _
    // Predicated region
    $region10: #{mse_pallas.1} parent=1 // pred_check
      _
    $region11: #{mse_pallas.1} parent=1 // pred_check_branch
      %44 = sbr.rel (0) target = $region13
    $region12: #{mse_pallas.1} parent=1 // pred_region
      %45 = dma.done [#allocation4], 512
    $region13: #{mse_pallas.1} parent=1 // pred_fallthru
      _
    // Predicated region
    $region14: #{mse_pallas.1} parent=1 // pred_check
      _
    $region15: #{mse_pallas.1} parent=1 // pred_check_branch
      %47 = sbr.rel (0) target = $region17
    $region16: #{mse_pallas.1} parent=1 // pred_region
      %48 = dma.done [#allocation6], 512
    $region17: #{mse_pallas.1} parent=1 // pred_fallthru
      _
    %s49 = sadd.s32 0, 0
    %s50 = smul.u32 2, %s49
    %s51 = sadd.s32 0, 0
    %s52 = smul.u32 2, %s51
    %p53 = scmp.eq.s32.totalorder 0, 0
    // Predicated region
    $region18: #{mse_pallas.1} parent=1 // pred_check
      %p54 = pneg %p53
    $region19: #{mse_pallas.1} parent=1 // pred_check_branch
      %56 = sbr.rel (%p54) target = $region21
    $region20: #{mse_pallas.1} parent=1 // pred_region
      %57 = vst [vmem:[#allocation2] sm:$0xff] 0.0
      %58 = vst [vmem:[#allocation2 + $0x8] sm:$0xff] 0.0
    $region21: #{mse_pallas.1} parent=1 // pred_fallthru
      _
    %v59 = vld [vmem:[#allocation3] sm:$0xff]
    %v60 = vld [vmem:[#allocation3 + $0x8] sm:$0xff]
    %v61 = vld [vmem:[#allocation3 + $0x10] sm:$0xff]
    %v62 = vld [vmem:[#allocation3 + $0x18] sm:$0xff]
    %v63 = vld [vmem:[#allocation5] sm:$0xff]
    %v64 = vld [vmem:[#allocation5 + $0x8] sm:$0xff]
    %v65 = vld [vmem:[#allocation5 + $0x10] sm:$0xff]
    %v66 = vld [vmem:[#allocation5 + $0x18] sm:$0xff]
    %v67 = vsub.f32 %v59, %v63
    %v68 = vsub.f32 %v60, %v64
    %v69 = vsub.f32 %v61, %v65
    %v70 = vsub.f32 %v62, %v66
    %v71 = vmul.f32 %v67, %v67
    %v72 = vmul.f32 %v68, %v68
    %v73 = vmul.f32 %v69, %v69
    %v74 = vmul.f32 %v70, %v70
    %v75 = vld [vmem:[#allocation2] sm:$0xff]
    %v76 = vld [vmem:[#allocation2 + $0x8] sm:$0xff]
    %v77 = vadd.f32 %v71, %v73
    %v78 = vadd.f32 %v72, %v74
    %v79 = vadd.f32 %v75, %v77
    %v80 = vadd.f32 %v76, %v78
    %81 = vst [vmem:[#allocation2] sm:$0xff] %v79
    %82 = vst [vmem:[#allocation2 + $0x8] sm:$0xff] %v80
    // Predicated region
    $region22: #{mse_pallas.1} parent=1 // pred_check
      %p83 = pneg %p53
    $region23: #{mse_pallas.1} parent=1 // pred_check_branch
      %85 = sbr.rel (%p83) target = $region25
    $region24: #{mse_pallas.1} parent=1 // pred_region
      %v86 = vld [vmem:[#allocation2] sm:$0xff]
      %v87 = vld [vmem:[#allocation2 + $0x8] sm:$0xff]
      %v88 = vadd.f32 %v86, %v87
      %89 = vadd.xlane.f32.xlu0 %v88
      %v90 = vpop.xlane.xlu0 %89
      %v91 = vrot.slane %v90, 4
      %v92 = vadd.f32 %v90, %v91
      %v93 = vrot.slane %v92, 2
      %v94 = vadd.f32 %v92, %v93
      %v95 = vrot.slane %v94, 1
      %v96 = vadd.f32 %v94, %v95
      %s97 = vtos %v96
      %s98 = smul.f32 %s97, 0.00024414063
      %v99 = vstv %s98
      %100 = vst [vmem:[%s2] sm:$0xff] %v99
    $region25: #{mse_pallas.1} parent=1 // pred_fallthru
      _
    // Predicated region
    $region26: #{mse_pallas.1} parent=1 // pred_check
      _
    $region27: #{mse_pallas.1} parent=1 // pred_check_branch
      %102 = sbr.rel (0) target = $region29
    $region28: #{mse_pallas.1} parent=1 // pred_region
      _
    $region29: #{mse_pallas.1} parent=1 // pred_fallthru
      _
    // Predicated region
    $region30: #{mse_pallas.1} parent=1 // pred_check
      _
    $region31: #{mse_pallas.1} parent=1 // pred_check_branch
      %104 = sbr.rel (0) target = $region33
    $region32: #{mse_pallas.1} parent=1 // pred_region
      _
    $region33: #{mse_pallas.1} parent=1 // pred_fallthru
      _
    %105 = vsyncpa [#allocation4], 1
    %106 = vsyncpa [#allocation6], 1

</llo_original>
